<compile_context>
chip_gen: v5e
topology: v5e:2x2
jax: 0.10.0
libtpu: 0.0.40
codegen_flags: <defaults>
</compile_context>

<pallas_src>
import functools

import jax
import jax.numpy as jnp
from jax import lax
from jax.experimental import pallas as pl
from jax.experimental.pallas import tpu as pltpu


def _vmem_spec():
    return pl.BlockSpec(memory_space=pltpu.MemorySpace.VMEM)


# ----------------- fused bidirectional LSTM layer (one kernel) ----------------
def _bidir_lstm_kernel(x_ref, wih_ref, whh_ref, b_ref, out_ref,
                       xw_sc, fwd_sc, bwd_sc, h_sc, c_sc, *, bp, seq_len):
    # x_ref:   (T*BP, D)   flattened (time, padded-batch) rows
    # wih_ref: (D, 8H)     gate-major, direction-minor columns:
    #                      [i_f i_b f_f f_b g_f g_b o_f o_b]
    # whh_ref: (2H, 8H)    block-diagonal (rows 0:H -> fwd h, H:2H -> bwd h)
    # b_ref:   (1, 8H)     combined b_ih + b_hh, same column layout
    # out_ref: (T*BP, 2H)  [h_fwd | h_bwd] per row (PyTorch bidirectional layout)
    G = wih_ref.shape[1]            # 8H
    H2 = G // 4                     # 2H
    H = H2 // 2
    T = seq_len

    # Hoisted input projection: one matmul for all timesteps & both directions.
    xw_sc[...] = (jnp.dot(x_ref[...], wih_ref[...],
                          preferred_element_type=jnp.float32) + b_ref[...])

    h_sc[...] = jnp.zeros_like(h_sc)
    c_sc[...] = jnp.zeros_like(c_sc)

    # Loop-invariant loads / broadcasts hoisted out of the recurrence.
    whh = whh_ref[...]                                           # (2H, 8H)
    lane = lax.broadcasted_iota(jnp.int32, (bp, G), 1)
    is_fwd_col = (lane % H2) < H                                 # fwd-gate columns

    def step(t, carry):
        row_f = pl.multiple_of(t * bp, bp)                       # fwd time t
        row_b = pl.multiple_of((T - 1 - t) * bp, bp)             # bwd time T-1-t
        xw_f = xw_sc[pl.ds(row_f, bp), :]                        # (BP, 8H)
        xw_b = xw_sc[pl.ds(row_b, bp), :]                        # (BP, 8H)
        rec = jnp.dot(h_sc[...], whh, preferred_element_type=jnp.float32)
        gates = jnp.where(is_fwd_col, xw_f, xw_b) + rec          # (BP, 8H)
        # PyTorch gate order i, f, g, o; each 2H block is [fwd | bwd].
        i = jax.nn.sigmoid(gates[:, 0 * H2:1 * H2])
        f = jax.nn.sigmoid(gates[:, 1 * H2:2 * H2])
        g = jnp.tanh(gates[:, 2 * H2:3 * H2])
        o = jax.nn.sigmoid(gates[:, 3 * H2:4 * H2])
        c_new = f * c_sc[...] + i * g                            # (BP, 2H)
        h_new = o * jnp.tanh(c_new)
        c_sc[...] = c_new
        h_sc[...] = h_new
        # fwd half of h_new belongs to time t, bwd half to time T-1-t.
        fwd_sc[pl.ds(row_f, bp), :] = h_new
        bwd_sc[pl.ds(row_b, bp), :] = h_new
        return carry

    lax.fori_loop(0, T, step, 0)

    lane2 = lax.broadcasted_iota(jnp.int32, out_ref.shape, 1)
    out_ref[...] = jnp.where(lane2 < H, fwd_sc[...], bwd_sc[...])


def bidir_lstm(x2d, wih, whh, b, *, bp, seq_len):
    n_rows = x2d.shape[0]            # T * BP
    G = wih.shape[1]
    H2 = G // 4
    kernel = functools.partial(_bidir_lstm_kernel, bp=bp, seq_len=seq_len)
    return pl.pallas_call(
        kernel,
        out_shape=jax.ShapeDtypeStruct((n_rows, H2), jnp.float32),
        in_specs=[_vmem_spec()] * 4,
        out_specs=_vmem_spec(),
        scratch_shapes=[pltpu.VMEM((n_rows, G), jnp.float32),    # input proj
                        pltpu.VMEM((n_rows, H2), jnp.float32),   # fwd h history
                        pltpu.VMEM((n_rows, H2), jnp.float32),   # bwd h history
                        pltpu.VMEM((bp, H2), jnp.float32),       # h state
                        pltpu.VMEM((bp, H2), jnp.float32)],      # c state
    )(x2d, wih, whh, b)


# -------------- fused NeuralODE (affine RK4 map) + ReLU + final Linear --------
def _ode_final_kernel(h_ref, m_ref, c_ref, wf_ref, bf_ref, o_ref):
    z = (jnp.dot(h_ref[...], m_ref[...], preferred_element_type=jnp.float32)
         + c_ref[...])
    z = jnp.maximum(z, 0.0)
    o_ref[...] = (jnp.dot(z, wf_ref[...], preferred_element_type=jnp.float32)
                  + bf_ref[...])


def ode_final(h2d, ode_m, ode_c, wf, bf):
    n_rows = h2d.shape[0]
    n_out = wf.shape[1]
    return pl.pallas_call(
        _ode_final_kernel,
        out_shape=jax.ShapeDtypeStruct((n_rows, n_out), jnp.float32),
        in_specs=[_vmem_spec()] * 5,
        out_specs=_vmem_spec(),
    )(h2d, ode_m, ode_c, wf, bf)


# --------------------------- parameter preparation ----------------------------
def _interleave_gate_columns(wf, wb):
    """(rows,4H) x2 -> (rows,8H), columns [i_f i_b f_f f_b g_f g_b o_f o_b]."""
    rows = wf.shape[0]
    H = wf.shape[1] // 4
    stacked = jnp.stack([wf.reshape(rows, 4, H), wb.reshape(rows, 4, H)], axis=2)
    return stacked.reshape(rows, 8 * H)


def _rk4_affine_map(W, b, n_steps):
    """Affine map exactly equivalent to n_steps of RK4 on dz/dt = z @ W + b over [0,1]."""
    n = W.shape[0]
    dt = 1.0 / float(n_steps)
    eye = jnp.eye(n, dtype=jnp.float32)
    K1, k1 = W, b
    K2, k2 = W + 0.5 * dt * (K1 @ W), b + 0.5 * dt * (k1 @ W)
    K3, k3 = W + 0.5 * dt * (K2 @ W), b + 0.5 * dt * (k2 @ W)
    K4, k4 = W + dt * (K3 @ W), b + dt * (k3 @ W)
    P = eye + (dt / 6.0) * (K1 + 2.0 * K2 + 2.0 * K3 + K4)    # one-step map
    q = (dt / 6.0) * (k1 + 2.0 * k2 + 2.0 * k3 + k4)
    M, c = eye, jnp.zeros_like(b)
    for _ in range(n_steps):                                   # compose n steps
        c = c @ P + q
        M = M @ P
    return M, c


def prepare_params(params, n_ode_steps=8):
    def prep_lstm(p):
        H = p["whh_f"].shape[0]
        zpad = jnp.zeros((H, 4 * H), jnp.float32)
        wih = _interleave_gate_columns(p["wih_f"], p["wih_b"])
        b = _interleave_gate_columns(p["b_f"], p["b_b"])
        whh = _interleave_gate_columns(
            jnp.concatenate([p["whh_f"], zpad], axis=0),
            jnp.concatenate([zpad, p["whh_b"]], axis=0))
        return (wih, whh, b)

    ode_m, ode_c = _rk4_affine_map(params["field_w"], params["field_b"], n_ode_steps)
    return dict(lstm1=prep_lstm(params["lstm1"]),
                lstm2=prep_lstm(params["lstm2"]),
                ode_m=ode_m, ode_c=ode_c,
                final_w=params["final_w"], final_b=params["final_b"])


# ------------------------------ full forward ---------------------------------
def lstm_node_forward(x_btf, prep):
    B, T, _ = x_btf.shape
    bp = ((B + 7) // 8) * 8                         # pad batch to 8 sublanes
    x = jnp.transpose(x_btf, (1, 0, 2))             # (T, B, F) once at entry
    x = jnp.pad(x, ((0, 0), (0, bp - B), (0, 0)))   # (T, BP, F)
    h = x.reshape(T * bp, -1)
    # dropout layers are identity in eval mode
    h = bidir_lstm(h, *prep["lstm1"], bp=bp, seq_len=T)
    h = bidir_lstm(h, *prep["lstm2"], bp=bp, seq_len=T)
    h = bidir_lstm(h, *prep["lstm2"], bp=bp, seq_len=T)   # lstm2 applied twice, as in the torch forward
    y = ode_final(h, prep["ode_m"], prep["ode_c"], prep["final_w"], prep["final_b"])
    y = y.reshape(T, bp, -1)[:, :B]
    return jnp.transpose(y, (1, 0, 2))              # (B, T, C) once at exit


# --------------------------- deterministic init -------------------------------
def _uniform(key, shape, scale):
    return jax.random.uniform(key, shape, jnp.float32, minval=-scale, maxval=scale)


def _init_bidir_lstm(key, in_dim, hidden):
    ks = jax.random.split(key, 8)
    s = 1.0 / float(hidden) ** 0.5

    def one_dir(k0, k1, k2, k3):
        wih = _uniform(k0, (in_dim, 4 * hidden), s)     # transposed vs torch
        whh = _uniform(k1, (hidden, 4 * hidden), s)
        b = (_uniform(k2, (1, 4 * hidden), s) + _uniform(k3, (1, 4 * hidden), s))
        return wih, whh, b

    wih_f, whh_f, b_f = one_dir(*ks[0:4])
    wih_b, whh_b, b_b = one_dir(*ks[4:8])
    return dict(wih_f=wih_f, whh_f=whh_f, b_f=b_f,
                wih_b=wih_b, whh_b=whh_b, b_b=b_b)


def init_params(key, num_features, hidden, num_classes):
    k1, k2, k3, k4, k5, k6 = jax.random.split(key, 6)
    two_h = 2 * hidden
    s_field = 1.0 / float(two_h) ** 0.5
    return dict(
        lstm1=_init_bidir_lstm(k1, num_features, hidden),
        lstm2=_init_bidir_lstm(k2, two_h, hidden),
        field_w=_uniform(k3, (two_h, two_h), s_field),
        field_b=_uniform(k4, (1, two_h), s_field),
        final_w=_uniform(k5, (two_h, num_classes), s_field),
        final_b=_uniform(k6, (1, num_classes), s_field),
    )


if __name__ == "__main__":
    num_features, hidden_size, num_classes = 8, 16, 5
    B, T = 2, 8

    key = jax.random.PRNGKey(0)
    kx, kp = jax.random.split(key)
    x = jax.random.normal(kx, (B, T, num_features), dtype=jnp.float32)
    params = init_params(kp, num_features, hidden_size, num_classes)
    prep = prepare_params(params)

    fwd = jax.jit(lstm_node_forward)
    out = fwd(x, prep)
    jax.block_until_ready(out)
    assert out.shape == (B, T, num_classes), out.shape
    print("KERNEL_OK")
</pallas_src>

<mosaic_0001>
module attributes {stable_mosaic.version = 11 : i64} {
  func.func @_bidir_lstm_kernel(%arg0: memref<64x8xf32, #tpu.memory_space<vmem>>, %arg1: memref<8x128xf32, #tpu.memory_space<vmem>>, %arg2: memref<32x128xf32, #tpu.memory_space<vmem>>, %arg3: memref<1x128xf32, #tpu.memory_space<vmem>>, %arg4: memref<64x32xf32, #tpu.memory_space<vmem>>, %arg5: memref<64x128xf32, #tpu.memory_space<vmem>>, %arg6: memref<64x32xf32, #tpu.memory_space<vmem>>, %arg7: memref<64x32xf32, #tpu.memory_space<vmem>>, %arg8: memref<8x32xf32, #tpu.memory_space<vmem>>, %arg9: memref<8x32xf32, #tpu.memory_space<vmem>>) attributes {dimension_semantics = [], scalar_prefetch = 0 : i64, scratch_operands = 5 : i64, tpu.core_type = #tpu.core_type<tc>} {
    %c0 = arith.constant 0 : index
    %c0_0 = arith.constant 0 : index
    %0 = vector.load %arg0[%c0, %c0_0] : memref<64x8xf32, #tpu.memory_space<vmem>>, vector<64x8xf32>
    %c0_1 = arith.constant 0 : index
    %c0_2 = arith.constant 0 : index
    %1 = vector.load %arg1[%c0_1, %c0_2] : memref<8x128xf32, #tpu.memory_space<vmem>>, vector<8x128xf32>
    %cst = arith.constant dense<0.000000e+00> : vector<64x128xf32>
    %2 = tpu.matmul %0, %1, %cst {dimension_numbers = #tpu.dot_dimension_numbers<[1], [0], [0], [1], [0, 0, 1, 1], [], []>} : vector<64x8xf32>, vector<8x128xf32>, vector<64x128xf32> -> vector<64x128xf32>
    %c0_3 = arith.constant 0 : index
    %c0_4 = arith.constant 0 : index
    %3 = vector.load %arg3[%c0_3, %c0_4] : memref<1x128xf32, #tpu.memory_space<vmem>>, vector<1x128xf32>
    %4 = vector.broadcast %3 : vector<1x128xf32> to vector<64x128xf32>
    %5 = arith.addf %2, %4 : vector<64x128xf32>
    %c0_5 = arith.constant 0 : index
    %c0_6 = arith.constant 0 : index
    %6 = vector.load %arg5[%c0_5, %c0_6] : memref<64x128xf32, #tpu.memory_space<vmem>>, vector<64x128xf32>
    tpu.vector_store %arg5[%c0_5, %c0_6], %5 {strides = array<i32>} : memref<64x128xf32, #tpu.memory_space<vmem>>, vector<64x128xf32>,
    %cst_7 = arith.constant 0.000000e+00 : f32
    %7 = vector.broadcast %cst_7 : f32 to vector<8x32xf32>
    %c0_8 = arith.constant 0 : index
    %c0_9 = arith.constant 0 : index
    %8 = vector.load %arg8[%c0_8, %c0_9] : memref<8x32xf32, #tpu.memory_space<vmem>>, vector<8x32xf32>
    tpu.vector_store %arg8[%c0_8, %c0_9], %7 {strides = array<i32>} : memref<8x32xf32, #tpu.memory_space<vmem>>, vector<8x32xf32>,
    %cst_10 = arith.constant 0.000000e+00 : f32
    %9 = vector.broadcast %cst_10 : f32 to vector<8x32xf32>
    %c0_11 = arith.constant 0 : index
    %c0_12 = arith.constant 0 : index
    %10 = vector.load %arg9[%c0_11, %c0_12] : memref<8x32xf32, #tpu.memory_space<vmem>>, vector<8x32xf32>
    tpu.vector_store %arg9[%c0_11, %c0_12], %9 {strides = array<i32>} : memref<8x32xf32, #tpu.memory_space<vmem>>, vector<8x32xf32>,
    %c0_13 = arith.constant 0 : index
    %c0_14 = arith.constant 0 : index
    %11 = vector.load %arg2[%c0_13, %c0_14] : memref<32x128xf32, #tpu.memory_space<vmem>>, vector<32x128xf32>
    %12 = tpu.iota {dimensions = array<i32: 1>} : vector<8x128xi32>
    %c32_i32 = arith.constant 32 : i32
    %c0_i32 = arith.constant 0 : i32
    %13 = arith.cmpi eq, %c32_i32, %c0_i32 : i32
    %c1_i32 = arith.constant 1 : i32
    %14 = arith.select %13, %c1_i32, %c32_i32 : i32
    %15 = vector.broadcast %14 : i32 to vector<8x128xi32>
    %16 = arith.remsi %12, %15 : vector<8x128xi32>
    %c0_i32_15 = arith.constant 0 : i32
    %17 = vector.broadcast %c0_i32_15 : i32 to vector<8x128xi32>
    %18 = arith.cmpi ne, %16, %17 : vector<8x128xi32>
    %c0_i32_16 = arith.constant 0 : i32
    %19 = vector.broadcast %c0_i32_16 : i32 to vector<8x128xi32>
    %20 = arith.cmpi slt, %16, %19 : vector<8x128xi32>
    %c0_i32_17 = arith.constant 0 : i32
    %21 = arith.cmpi slt, %14, %c0_i32_17 : i32
    %22 = vector.broadcast %21 : i1 to vector<8x128xi1>
    %23 = vector.broadcast %22 : vector<8x128xi1> to vector<8x128xi1>
    %24 = arith.xori %20, %23 : vector<8x128xi1>
    %25 = arith.andi %24, %18 : vector<8x128xi1>
    %26 = vector.broadcast %14 : i32 to vector<8x128xi32>
    %27 = arith.addi %16, %26 : vector<8x128xi32>
    %28 = arith.select %25, %27, %16 : vector<8x128xi1>, vector<8x128xi32>
    %c16_i32 = arith.constant 16 : i32
    %29 = vector.broadcast %c16_i32 : i32 to vector<8x128xi32>
    %30 = arith.cmpi slt, %28, %29 : vector<8x128xi32>
    %c0_i32_18 = arith.constant 0 : i32
    %c8_i32 = arith.constant 8 : i32
    %31 = arith.addi %c0_i32_18, %c8_i32 : i32
    %c1_i32_19 = arith.constant 1 : i32
    scf.for %arg10 = %c0_i32_18 to %31 step %c1_i32_19  : i32 {
      %c8_i32_28 = arith.constant 8 : i32
      %39 = arith.muli %arg10, %c8_i32_28 : i32
      %40 = tpu.assume_multiple %39, 8 : i32
      %c7_i32 = arith.constant 7 : i32
      %41 = arith.subi %c7_i32, %arg10 : i32
      %c8_i32_29 = arith.constant 8 : i32
      %42 = arith.muli %41, %c8_i32_29 : i32
      %43 = tpu.assume_multiple %42, 8 : i32
      %44 = arith.index_cast %40 : i32 to index
      %c0_30 = arith.constant 0 : index
      %45 = vector.load %arg5[%44, %c0_30] : memref<64x128xf32, #tpu.memory_space<vmem>>, vector<8x128xf32>
      %46 = arith.index_cast %43 : i32 to index
      %c0_31 = arith.constant 0 : index
      %47 = vector.load %arg5[%46, %c0_31] : memref<64x128xf32, #tpu.memory_space<vmem>>, vector<8x128xf32>
      %c0_32 = arith.constant 0 : index
      %c0_33 = arith.constant 0 : index
      %48 = vector.load %arg8[%c0_32, %c0_33] : memref<8x32xf32, #tpu.memory_space<vmem>>, vector<8x32xf32>
      %cst_34 = arith.constant dense<0.000000e+00> : vector<8x128xf32>
      %49 = tpu.matmul %48, %11, %cst_34 {dimension_numbers = #tpu.dot_dimension_numbers<[1], [0], [0], [1], [0, 0, 1, 1], [], []>} : vector<8x32xf32>, vector<32x128xf32>, vector<8x128xf32> -> vector<8x128xf32>
      %50 = arith.select %30, %45, %47 : vector<8x128xi1>, vector<8x128xf32>
      %51 = arith.addf %50, %49 : vector<8x128xf32>
      %52 = vector.extract_strided_slice %51 {offsets = [0, 0], sizes = [8, 32], strides = [1, 1]} : vector<8x128xf32> to vector<8x32xf32>
      %53 = arith.negf %52 : vector<8x32xf32>
      %54 = math.exp %53 : vector<8x32xf32>
      %cst_35 = arith.constant 1.000000e+00 : f32
      %55 = vector.broadcast %cst_35 : f32 to vector<8x32xf32>
      %56 = arith.addf %55, %54 : vector<8x32xf32>
      %57 = arith.divf %55, %56 : vector<8x32xf32>
      %58 = vector.extract_strided_slice %51 {offsets = [0, 32], sizes = [8, 32], strides = [1, 1]} : vector<8x128xf32> to vector<8x32xf32>
      %59 = arith.negf %58 : vector<8x32xf32>
      %60 = math.exp %59 : vector<8x32xf32>
      %cst_36 = arith.constant 1.000000e+00 : f32
      %61 = vector.broadcast %cst_36 : f32 to vector<8x32xf32>
      %62 = arith.addf %61, %60 : vector<8x32xf32>
      %63 = arith.divf %61, %62 : vector<8x32xf32>
      %64 = vector.extract_strided_slice %51 {offsets = [0, 64], sizes = [8, 32], strides = [1, 1]} : vector<8x128xf32> to vector<8x32xf32>
      %65 = math.tanh %64 : vector<8x32xf32>
      %66 = vector.extract_strided_slice %51 {offsets = [0, 96], sizes = [8, 32], strides = [1, 1]} : vector<8x128xf32> to vector<8x32xf32>
      %67 = arith.negf %66 : vector<8x32xf32>
      %68 = math.exp %67 : vector<8x32xf32>
      %cst_37 = arith.constant 1.000000e+00 : f32
      %69 = vector.broadcast %cst_37 : f32 to vector<8x32xf32>
      %70 = arith.addf %69, %68 : vector<8x32xf32>
      %71 = arith.divf %69, %70 : vector<8x32xf32>
      %c0_38 = arith.constant 0 : index
      %c0_39 = arith.constant 0 : index
      %72 = vector.load %arg9[%c0_38, %c0_39] : memref<8x32xf32, #tpu.memory_space<vmem>>, vector<8x32xf32>
      %73 = arith.mulf %63, %72 : vector<8x32xf32>
      %74 = arith.mulf %57, %65 : vector<8x32xf32>
      %75 = arith.addf %73, %74 : vector<8x32xf32>
      %76 = math.tanh %75 : vector<8x32xf32>
      %77 = arith.mulf %71, %76 : vector<8x32xf32>
      %c0_40 = arith.constant 0 : index
      %c0_41 = arith.constant 0 : index
      %78 = vector.load %arg9[%c0_40, %c0_41] : memref<8x32xf32, #tpu.memory_space<vmem>>, vector<8x32xf32>
      tpu.vector_store %arg9[%c0_40, %c0_41], %75 {strides = array<i32>} : memref<8x32xf32, #tpu.memory_space<vmem>>, vector<8x32xf32>,
      %c0_42 = arith.constant 0 : index
      %c0_43 = arith.constant 0 : index
      %79 = vector.load %arg8[%c0_42, %c0_43] : memref<8x32xf32, #tpu.memory_space<vmem>>, vector<8x32xf32>
      tpu.vector_store %arg8[%c0_42, %c0_43], %77 {strides = array<i32>} : memref<8x32xf32, #tpu.memory_space<vmem>>, vector<8x32xf32>,
      %80 = arith.index_cast %40 : i32 to index
      %c0_44 = arith.constant 0 : index
      %81 = vector.load %arg6[%80, %c0_44] : memref<64x32xf32, #tpu.memory_space<vmem>>, vector<8x32xf32>
      tpu.vector_store %arg6[%80, %c0_44], %77 {strides = array<i32>} : memref<64x32xf32, #tpu.memory_space<vmem>>, vector<8x32xf32>,
      %82 = arith.index_cast %43 : i32 to index
      %c0_45 = arith.constant 0 : index
      %83 = vector.load %arg7[%82, %c0_45] : memref<64x32xf32, #tpu.memory_space<vmem>>, vector<8x32xf32>
      tpu.vector_store %arg7[%82, %c0_45], %77 {strides = array<i32>} : memref<64x32xf32, #tpu.memory_space<vmem>>, vector<8x32xf32>,
    }
    %c8_i32_20 = arith.constant 8 : i32
    %32 = tpu.iota {dimensions = array<i32: 1>} : vector<64x32xi32>
    %c16_i32_21 = arith.constant 16 : i32
    %33 = vector.broadcast %c16_i32_21 : i32 to vector<64x32xi32>
    %34 = arith.cmpi slt, %32, %33 : vector<64x32xi32>
    %c0_22 = arith.constant 0 : index
    %c0_23 = arith.constant 0 : index
    %35 = vector.load %arg6[%c0_22, %c0_23] : memref<64x32xf32, #tpu.memory_space<vmem>>, vector<64x32xf32>
    %c0_24 = arith.constant 0 : index
    %c0_25 = arith.constant 0 : index
    %36 = vector.load %arg7[%c0_24, %c0_25] : memref<64x32xf32, #tpu.memory_space<vmem>>, vector<64x32xf32>
    %37 = arith.select %34, %35, %36 : vector<64x32xi1>, vector<64x32xf32>
    %c0_26 = arith.constant 0 : index
    %c0_27 = arith.constant 0 : index
    %38 = vector.load %arg4[%c0_26, %c0_27] : memref<64x32xf32, #tpu.memory_space<vmem>>, vector<64x32xf32>
    tpu.vector_store %arg4[%c0_26, %c0_27], %37 {strides = array<i32>} : memref<64x32xf32, #tpu.memory_space<vmem>>, vector<64x32xf32>,
    return
  }
}

module attributes {stable_mosaic.version = 11 : i64} {
  func.func @_bidir_lstm_kernel(%arg0: memref<64x32xf32, #tpu.memory_space<vmem>>, %arg1: memref<32x128xf32, #tpu.memory_space<vmem>>, %arg2: memref<32x128xf32, #tpu.memory_space<vmem>>, %arg3: memref<1x128xf32, #tpu.memory_space<vmem>>, %arg4: memref<64x32xf32, #tpu.memory_space<vmem>>, %arg5: memref<64x128xf32, #tpu.memory_space<vmem>>, %arg6: memref<64x32xf32, #tpu.memory_space<vmem>>, %arg7: memref<64x32xf32, #tpu.memory_space<vmem>>, %arg8: memref<8x32xf32, #tpu.memory_space<vmem>>, %arg9: memref<8x32xf32, #tpu.memory_space<vmem>>) attributes {dimension_semantics = [], scalar_prefetch = 0 : i64, scratch_operands = 5 : i64, tpu.core_type = #tpu.core_type<tc>} {
    %c0 = arith.constant 0 : index
    %c0_0 = arith.constant 0 : index
    %0 = vector.load %arg0[%c0, %c0_0] : memref<64x32xf32, #tpu.memory_space<vmem>>, vector<64x32xf32>
    %c0_1 = arith.constant 0 : index
    %c0_2 = arith.constant 0 : index
    %1 = vector.load %arg1[%c0_1, %c0_2] : memref<32x128xf32, #tpu.memory_space<vmem>>, vector<32x128xf32>
    %cst = arith.constant dense<0.000000e+00> : vector<64x128xf32>
    %2 = tpu.matmul %0, %1, %cst {dimension_numbers = #tpu.dot_dimension_numbers<[1], [0], [0], [1], [0, 0, 1, 1], [], []>} : vector<64x32xf32>, vector<32x128xf32>, vector<64x128xf32> -> vector<64x128xf32>
    %c0_3 = arith.constant 0 : index
    %c0_4 = arith.constant 0 : index
    %3 = vector.load %arg3[%c0_3, %c0_4] : memref<1x128xf32, #tpu.memory_space<vmem>>, vector<1x128xf32>
    %4 = vector.broadcast %3 : vector<1x128xf32> to vector<64x128xf32>
    %5 = arith.addf %2, %4 : vector<64x128xf32>
    %c0_5 = arith.constant 0 : index
    %c0_6 = arith.constant 0 : index
    %6 = vector.load %arg5[%c0_5, %c0_6] : memref<64x128xf32, #tpu.memory_space<vmem>>, vector<64x128xf32>
    tpu.vector_store %arg5[%c0_5, %c0_6], %5 {strides = array<i32>} : memref<64x128xf32, #tpu.memory_space<vmem>>, vector<64x128xf32>,
    %cst_7 = arith.constant 0.000000e+00 : f32
    %7 = vector.broadcast %cst_7 : f32 to vector<8x32xf32>
    %c0_8 = arith.constant 0 : index
    %c0_9 = arith.constant 0 : index
    %8 = vector.load %arg8[%c0_8, %c0_9] : memref<8x32xf32, #tpu.memory_space<vmem>>, vector<8x32xf32>
    tpu.vector_store %arg8[%c0_8, %c0_9], %7 {strides = array<i32>} : memref<8x32xf32, #tpu.memory_space<vmem>>, vector<8x32xf32>,
    %cst_10 = arith.constant 0.000000e+00 : f32
    %9 = vector.broadcast %cst_10 : f32 to vector<8x32xf32>
    %c0_11 = arith.constant 0 : index
    %c0_12 = arith.constant 0 : index
    %10 = vector.load %arg9[%c0_11, %c0_12] : memref<8x32xf32, #tpu.memory_space<vmem>>, vector<8x32xf32>
    tpu.vector_store %arg9[%c0_11, %c0_12], %9 {strides = array<i32>} : memref<8x32xf32, #tpu.memory_space<vmem>>, vector<8x32xf32>,
    %c0_13 = arith.constant 0 : index
    %c0_14 = arith.constant 0 : index
    %11 = vector.load %arg2[%c0_13, %c0_14] : memref<32x128xf32, #tpu.memory_space<vmem>>, vector<32x128xf32>
    %12 = tpu.iota {dimensions = array<i32: 1>} : vector<8x128xi32>
    %c32_i32 = arith.constant 32 : i32
    %c0_i32 = arith.constant 0 : i32
    %13 = arith.cmpi eq, %c32_i32, %c0_i32 : i32
    %c1_i32 = arith.constant 1 : i32
    %14 = arith.select %13, %c1_i32, %c32_i32 : i32
    %15 = vector.broadcast %14 : i32 to vector<8x128xi32>
    %16 = arith.remsi %12, %15 : vector<8x128xi32>
    %c0_i32_15 = arith.constant 0 : i32
    %17 = vector.broadcast %c0_i32_15 : i32 to vector<8x128xi32>
    %18 = arith.cmpi ne, %16, %17 : vector<8x128xi32>
    %c0_i32_16 = arith.constant 0 : i32
    %19 = vector.broadcast %c0_i32_16 : i32 to vector<8x128xi32>
    %20 = arith.cmpi slt, %16, %19 : vector<8x128xi32>
    %c0_i32_17 = arith.constant 0 : i32
    %21 = arith.cmpi slt, %14, %c0_i32_17 : i32
    %22 = vector.broadcast %21 : i1 to vector<8x128xi1>
    %23 = vector.broadcast %22 : vector<8x128xi1> to vector<8x128xi1>
    %24 = arith.xori %20, %23 : vector<8x128xi1>
    %25 = arith.andi %24, %18 : vector<8x128xi1>
    %26 = vector.broadcast %14 : i32 to vector<8x128xi32>
    %27 = arith.addi %16, %26 : vector<8x128xi32>
    %28 = arith.select %25, %27, %16 : vector<8x128xi1>, vector<8x128xi32>
    %c16_i32 = arith.constant 16 : i32
    %29 = vector.broadcast %c16_i32 : i32 to vector<8x128xi32>
    %30 = arith.cmpi slt, %28, %29 : vector<8x128xi32>
    %c0_i32_18 = arith.constant 0 : i32
    %c8_i32 = arith.constant 8 : i32
    %31 = arith.addi %c0_i32_18, %c8_i32 : i32
    %c1_i32_19 = arith.constant 1 : i32
    scf.for %arg10 = %c0_i32_18 to %31 step %c1_i32_19  : i32 {
      %c8_i32_28 = arith.constant 8 : i32
      %39 = arith.muli %arg10, %c8_i32_28 : i32
      %40 = tpu.assume_multiple %39, 8 : i32
      %c7_i32 = arith.constant 7 : i32
      %41 = arith.subi %c7_i32, %arg10 : i32
      %c8_i32_29 = arith.constant 8 : i32
      %42 = arith.muli %41, %c8_i32_29 : i32
      %43 = tpu.assume_multiple %42, 8 : i32
      %44 = arith.index_cast %40 : i32 to index
      %c0_30 = arith.constant 0 : index
      %45 = vector.load %arg5[%44, %c0_30] : memref<64x128xf32, #tpu.memory_space<vmem>>, vector<8x128xf32>
      %46 = arith.index_cast %43 : i32 to index
      %c0_31 = arith.constant 0 : index
      %47 = vector.load %arg5[%46, %c0_31] : memref<64x128xf32, #tpu.memory_space<vmem>>, vector<8x128xf32>
      %c0_32 = arith.constant 0 : index
      %c0_33 = arith.constant 0 : index
      %48 = vector.load %arg8[%c0_32, %c0_33] : memref<8x32xf32, #tpu.memory_space<vmem>>, vector<8x32xf32>
      %cst_34 = arith.constant dense<0.000000e+00> : vector<8x128xf32>
      %49 = tpu.matmul %48, %11, %cst_34 {dimension_numbers = #tpu.dot_dimension_numbers<[1], [0], [0], [1], [0, 0, 1, 1], [], []>} : vector<8x32xf32>, vector<32x128xf32>, vector<8x128xf32> -> vector<8x128xf32>
      %50 = arith.select %30, %45, %47 : vector<8x128xi1>, vector<8x128xf32>
      %51 = arith.addf %50, %49 : vector<8x128xf32>
      %52 = vector.extract_strided_slice %51 {offsets = [0, 0], sizes = [8, 32], strides = [1, 1]} : vector<8x128xf32> to vector<8x32xf32>
      %53 = arith.negf %52 : vector<8x32xf32>
      %54 = math.exp %53 : vector<8x32xf32>
      %cst_35 = arith.constant 1.000000e+00 : f32
      %55 = vector.broadcast %cst_35 : f32 to vector<8x32xf32>
      %56 = arith.addf %55, %54 : vector<8x32xf32>
      %57 = arith.divf %55, %56 : vector<8x32xf32>
      %58 = vector.extract_strided_slice %51 {offsets = [0, 32], sizes = [8, 32], strides = [1, 1]} : vector<8x128xf32> to vector<8x32xf32>
      %59 = arith.negf %58 : vector<8x32xf32>
      %60 = math.exp %59 : vector<8x32xf32>
      %cst_36 = arith.constant 1.000000e+00 : f32
      %61 = vector.broadcast %cst_36 : f32 to vector<8x32xf32>
      %62 = arith.addf %61, %60 : vector<8x32xf32>
      %63 = arith.divf %61, %62 : vector<8x32xf32>
      %64 = vector.extract_strided_slice %51 {offsets = [0, 64], sizes = [8, 32], strides = [1, 1]} : vector<8x128xf32> to vector<8x32xf32>
      %65 = math.tanh %64 : vector<8x32xf32>
      %66 = vector.extract_strided_slice %51 {offsets = [0, 96], sizes = [8, 32], strides = [1, 1]} : vector<8x128xf32> to vector<8x32xf32>
      %67 = arith.negf %66 : vector<8x32xf32>
      %68 = math.exp %67 : vector<8x32xf32>
      %cst_37 = arith.constant 1.000000e+00 : f32
      %69 = vector.broadcast %cst_37 : f32 to vector<8x32xf32>
      %70 = arith.addf %69, %68 : vector<8x32xf32>
      %71 = arith.divf %69, %70 : vector<8x32xf32>
      %c0_38 = arith.constant 0 : index
      %c0_39 = arith.constant 0 : index
      %72 = vector.load %arg9[%c0_38, %c0_39] : memref<8x32xf32, #tpu.memory_space<vmem>>, vector<8x32xf32>
      %73 = arith.mulf %63, %72 : vector<8x32xf32>
      %74 = arith.mulf %57, %65 : vector<8x32xf32>
      %75 = arith.addf %73, %74 : vector<8x32xf32>
      %76 = math.tanh %75 : vector<8x32xf32>
      %77 = arith.mulf %71, %76 : vector<8x32xf32>
      %c0_40 = arith.constant 0 : index
      %c0_41 = arith.constant 0 : index
      %78 = vector.load %arg9[%c0_40, %c0_41] : memref<8x32xf32, #tpu.memory_space<vmem>>, vector<8x32xf32>
      tpu.vector_store %arg9[%c0_40, %c0_41], %75 {strides = array<i32>} : memref<8x32xf32, #tpu.memory_space<vmem>>, vector<8x32xf32>,
      %c0_42 = arith.constant 0 : index
      %c0_43 = arith.constant 0 : index
      %79 = vector.load %arg8[%c0_42, %c0_43] : memref<8x32xf32, #tpu.memory_space<vmem>>, vector<8x32xf32>
      tpu.vector_store %arg8[%c0_42, %c0_43], %77 {strides = array<i32>} : memref<8x32xf32, #tpu.memory_space<vmem>>, vector<8x32xf32>,
      %80 = arith.index_cast %40 : i32 to index
      %c0_44 = arith.constant 0 : index
      %81 = vector.load %arg6[%80, %c0_44] : memref<64x32xf32, #tpu.memory_space<vmem>>, vector<8x32xf32>
      tpu.vector_store %arg6[%80, %c0_44], %77 {strides = array<i32>} : memref<64x32xf32, #tpu.memory_space<vmem>>, vector<8x32xf32>,
      %82 = arith.index_cast %43 : i32 to index
      %c0_45 = arith.constant 0 : index
      %83 = vector.load %arg7[%82, %c0_45] : memref<64x32xf32, #tpu.memory_space<vmem>>, vector<8x32xf32>
      tpu.vector_store %arg7[%82, %c0_45], %77 {strides = array<i32>} : memref<64x32xf32, #tpu.memory_space<vmem>>, vector<8x32xf32>,
    }
    %c8_i32_20 = arith.constant 8 : i32
    %32 = tpu.iota {dimensions = array<i32: 1>} : vector<64x32xi32>
    %c16_i32_21 = arith.constant 16 : i32
    %33 = vector.broadcast %c16_i32_21 : i32 to vector<64x32xi32>
    %34 = arith.cmpi slt, %32, %33 : vector<64x32xi32>
    %c0_22 = arith.constant 0 : index
    %c0_23 = arith.constant 0 : index
    %35 = vector.load %arg6[%c0_22, %c0_23] : memref<64x32xf32, #tpu.memory_space<vmem>>, vector<64x32xf32>
    %c0_24 = arith.constant 0 : index
    %c0_25 = arith.constant 0 : index
    %36 = vector.load %arg7[%c0_24, %c0_25] : memref<64x32xf32, #tpu.memory_space<vmem>>, vector<64x32xf32>
    %37 = arith.select %34, %35, %36 : vector<64x32xi1>, vector<64x32xf32>
    %c0_26 = arith.constant 0 : index
    %c0_27 = arith.constant 0 : index
    %38 = vector.load %arg4[%c0_26, %c0_27] : memref<64x32xf32, #tpu.memory_space<vmem>>, vector<64x32xf32>
    tpu.vector_store %arg4[%c0_26, %c0_27], %37 {strides = array<i32>} : memref<64x32xf32, #tpu.memory_space<vmem>>, vector<64x32xf32>,
    return
  }
}

module attributes {stable_mosaic.version = 11 : i64} {
  func.func @_ode_final_kernel(%arg0: memref<64x32xf32, #tpu.memory_space<vmem>>, %arg1: memref<32x32xf32, #tpu.memory_space<vmem>>, %arg2: memref<1x32xf32, #tpu.memory_space<vmem>>, %arg3: memref<32x5xf32, #tpu.memory_space<vmem>>, %arg4: memref<1x5xf32, #tpu.memory_space<vmem>>, %arg5: memref<64x5xf32, #tpu.memory_space<vmem>>) attributes {dimension_semantics = [], scalar_prefetch = 0 : i64, scratch_operands = 0 : i64, tpu.core_type = #tpu.core_type<tc>} {
    %c0 = arith.constant 0 : index
    %c0_0 = arith.constant 0 : index
    %0 = vector.load %arg0[%c0, %c0_0] : memref<64x32xf32, #tpu.memory_space<vmem>>, vector<64x32xf32>
    %c0_1 = arith.constant 0 : index
    %c0_2 = arith.constant 0 : index
    %1 = vector.load %arg1[%c0_1, %c0_2] : memref<32x32xf32, #tpu.memory_space<vmem>>, vector<32x32xf32>
    %cst = arith.constant dense<0.000000e+00> : vector<64x32xf32>
    %2 = tpu.matmul %0, %1, %cst {dimension_numbers = #tpu.dot_dimension_numbers<[1], [0], [0], [1], [0, 0, 1, 1], [], []>} : vector<64x32xf32>, vector<32x32xf32>, vector<64x32xf32> -> vector<64x32xf32>
    %c0_3 = arith.constant 0 : index
    %c0_4 = arith.constant 0 : index
    %3 = vector.load %arg2[%c0_3, %c0_4] : memref<1x32xf32, #tpu.memory_space<vmem>>, vector<1x32xf32>
    %4 = vector.broadcast %3 : vector<1x32xf32> to vector<64x32xf32>
    %5 = arith.addf %2, %4 : vector<64x32xf32>
    %cst_5 = arith.constant 0.000000e+00 : f32
    %6 = vector.broadcast %cst_5 : f32 to vector<64x32xf32>
    %7 = arith.maximumf %5, %6 : vector<64x32xf32>
    %c0_6 = arith.constant 0 : index
    %c0_7 = arith.constant 0 : index
    %8 = vector.load %arg3[%c0_6, %c0_7] : memref<32x5xf32, #tpu.memory_space<vmem>>, vector<32x5xf32>
    %cst_8 = arith.constant dense<0.000000e+00> : vector<64x5xf32>
    %9 = tpu.matmul %7, %8, %cst_8 {dimension_numbers = #tpu.dot_dimension_numbers<[1], [0], [0], [1], [0, 0, 1, 1], [], []>} : vector<64x32xf32>, vector<32x5xf32>, vector<64x5xf32> -> vector<64x5xf32>
    %c0_9 = arith.constant 0 : index
    %c0_10 = arith.constant 0 : index
    %10 = vector.load %arg4[%c0_9, %c0_10] : memref<1x5xf32, #tpu.memory_space<vmem>>, vector<1x5xf32>
    %11 = vector.broadcast %10 : vector<1x5xf32> to vector<64x5xf32>
    %12 = arith.addf %9, %11 : vector<64x5xf32>
    %c0_11 = arith.constant 0 : index
    %c0_12 = arith.constant 0 : index
    %13 = vector.load %arg5[%c0_11, %c0_12] : memref<64x5xf32, #tpu.memory_space<vmem>>, vector<64x5xf32>
    tpu.vector_store %arg5[%c0_11, %c0_12], %12 {strides = array<i32>} : memref<64x5xf32, #tpu.memory_space<vmem>>, vector<64x5xf32>,
    return
  }
}

</mosaic_0001>

<llo_original>
// kernel: lstm_node_forward.5
$region0: #{lstm_node_forward.5}
  #allocation0 [shape = 'u32[]', space=smem, size = 0x4, offset = 0x4, fixed_abs, tag = 'smem constant byte address 0x4 - core index']
  #allocation1 [shape = 'u32[72,128]{1,0:T(1,128)}', space=vmem, size = 0x9000, scoped, tag = 'internal scratch']
  #allocation2 [shape = 'f32[64,128]{1,0:T(8,128)}', space=vmem, size = 0x8000, scoped, tag = 'scratch operand']
  #allocation3 [shape = 'f32[64,32]{1,0:T(8,128)}', space=vmem, size = 0x8000, scoped, tag = 'scratch operand']
  #allocation4 [shape = 'f32[64,32]{1,0:T(8,128)}', space=vmem, size = 0x8000, scoped, tag = 'scratch operand']
  #allocation5 [shape = 'f32[8,32]{1,0:T(8,128)}', space=vmem, size = 0x1000, scoped, tag = 'scratch operand']
  #allocation6 [shape = 'f32[8,32]{1,0:T(8,128)}', space=vmem, size = 0x1000, scoped, tag = 'scratch operand']
  %s0 = inlined_call_operand.vmem [shape: f32[64,32], index: 0, kind: input, shape index: {}]
  %s1 = inlined_call_operand.vmem [shape: f32[32,128], index: 1, kind: input, shape index: {}]
  %s2 = inlined_call_operand.vmem [shape: f32[32,128], index: 2, kind: input, shape index: {}]
  %s3 = inlined_call_operand.vmem [shape: f32[1,128], index: 3, kind: input, shape index: {}]
  %s4 = inlined_call_operand.vmem [shape: f32[64,32], index: 4, kind: output, shape index: {}]
  %s5 = sld [smem:[#allocation0]]
  $region33: #{lstm_node_forward.5} parent=0
    _
  %s7 = ssub.s32 1, %s5
  %s8 = scalar_select 0, %s7, %s5
  // Predicated region
  $region2: #{lstm_node_forward.5} parent=0 // pred_check
    _
  $region3: #{lstm_node_forward.5} parent=0 // pred_check_branch
    %10 = sbr.rel (0) target = $region5
  $region4: #{lstm_node_forward.5} parent=0 // pred_region
    _
  $region5: #{lstm_node_forward.5} parent=0 // pred_fallthru
    _
  // Predicated region
  $region6: #{lstm_node_forward.5} parent=0 // pred_check
    _
  $region7: #{lstm_node_forward.5} parent=0 // pred_check_branch
    %12 = sbr.rel (0) target = $region9
  $region8: #{lstm_node_forward.5} parent=0 // pred_region
    _
  $region9: #{lstm_node_forward.5} parent=0 // pred_fallthru
    _
  // Predicated region
  $region10: #{lstm_node_forward.5} parent=0 // pred_check
    _
  $region11: #{lstm_node_forward.5} parent=0 // pred_check_branch
    %14 = sbr.rel (0) target = $region13
  $region12: #{lstm_node_forward.5} parent=0 // pred_region
    _
  $region13: #{lstm_node_forward.5} parent=0 // pred_fallthru
    _
  // Predicated region
  $region14: #{lstm_node_forward.5} parent=0 // pred_check
    _
  $region15: #{lstm_node_forward.5} parent=0 // pred_check_branch
    %16 = sbr.rel (0) target = $region17
  $region16: #{lstm_node_forward.5} parent=0 // pred_region
    _
  $region17: #{lstm_node_forward.5} parent=0 // pred_fallthru
    _
  %v17 = vld [vmem:[%s0] sm:$0xff]
  %v18 = vld [vmem:[%s0 + $0x8] sm:$0xff]
  %v19 = vld [vmem:[%s0 + $0x10] sm:$0xff]
  %v20 = vld [vmem:[%s0 + $0x18] sm:$0xff]
  %v21 = vld [vmem:[%s0 + $0x20] sm:$0xff]
  %v22 = vld [vmem:[%s0 + $0x28] sm:$0xff]
  %v23 = vld [vmem:[%s0 + $0x30] sm:$0xff]
  %v24 = vld [vmem:[%s0 + $0x38] sm:$0xff]
  %v25 = vld [vmem:[%s1] sm:$0xff]
  %v26 = vld [vmem:[%s1 + $0x8] sm:$0xff]
  %v27 = vld [vmem:[%s1 + $0x10] sm:$0xff]
  %v28 = vld [vmem:[%s1 + $0x18] sm:$0xff]
  %v29 = vld [vmem:[%s3] sm:$0x1]
  %v31 = vperm.slane %v29, 0
  %vm33 = vcmask 261120
  %v35 = vsel %vm33, %v17, 0
  %v38 = vsel %vm33, %v18, 0
  %v41 = vsel %vm33, %v19, 0
  %v44 = vsel %vm33, %v20, 0
  %v47 = vsel %vm33, %v21, 0
  %v50 = vsel %vm33, %v22, 0
  %v53 = vsel %vm33, %v23, 0
  %v56 = vsel %vm33, %v24, 0
  %58 = vmatpush.msra.mxu0 0.0
  %59 = vmatpush.msra.mxu0 0.0
  %60 = vmatpush.msra.mxu0 0.0
  %61 = vmatpush.msra.mxu0 0.0
  %62 = vmatpush.msra.mxu0 0.0
  %63 = vmatpush.msra.mxu0 0.0
  %64 = vmatpush.msra.mxu0 0.0
  %65 = vmatpush.msra.mxu0 0.0
  %66 = vmatpush.msra.mxu0 0.0
  %67 = vmatpush.msra.mxu0 0.0
  %68 = vmatpush.msra.mxu0 0.0
  %69 = vmatpush.msra.mxu0 0.0
  %70 = vmatpush.msra.mxu0 %v28
  %71 = vmatpush.msra.mxu0 %v27
  %72 = vmatpush.msra.mxu0 %v26
  %73 = vmatpush.msra.mxu0 %v25
  %74 = vmatmul.f32.gmra.mxu0 %v35
  %v75 = vpop.f32.mrf.mxu0
  %v76 = vadd.f32 %v31, %v75
  %77 = vmatmul.f32.gmra.mxu0 %v38
  %v78 = vpop.f32.mrf.mxu0
  %v79 = vadd.f32 %v31, %v78
  %80 = vmatmul.f32.gmra.mxu0 %v41
  %v81 = vpop.f32.mrf.mxu0
  %v82 = vadd.f32 %v31, %v81
  %83 = vmatmul.f32.gmra.mxu0 %v44
  %v84 = vpop.f32.mrf.mxu0
  %v85 = vadd.f32 %v31, %v84
  %86 = vmatmul.f32.gmra.mxu0 %v47
  %v87 = vpop.f32.mrf.mxu0
  %v88 = vadd.f32 %v31, %v87
  %89 = vmatmul.f32.gmra.mxu0 %v50
  %v90 = vpop.f32.mrf.mxu0
  %v91 = vadd.f32 %v31, %v90
  %92 = vmatmul.f32.gmra.mxu0 %v53
  %v93 = vpop.f32.mrf.mxu0
  %v94 = vadd.f32 %v31, %v93
  %95 = vmatmul.f32.gmra.mxu0 %v56
  %v96 = vpop.f32.mrf.mxu0
  %v97 = vadd.f32 %v31, %v96
  %98 = vdwg.mxu0
  %99 = vst [vmem:[#allocation2] sm:$0xff] %v76
  %100 = vst [vmem:[#allocation2 + $0x8] sm:$0xff] %v79
  %101 = vst [vmem:[#allocation2 + $0x10] sm:$0xff] %v82
  %102 = vst [vmem:[#allocation2 + $0x18] sm:$0xff] %v85
  %103 = vst [vmem:[#allocation2 + $0x20] sm:$0xff] %v88
  %104 = vst [vmem:[#allocation2 + $0x28] sm:$0xff] %v91
  %105 = vst [vmem:[#allocation2 + $0x30] sm:$0xff] %v94
  %106 = vst [vmem:[#allocation2 + $0x38] sm:$0xff] %v97
  %107 = vst.msk [vmem:[#allocation5] sm:$0xff] %vm33, 0.0
  %108 = vst.msk [vmem:[#allocation6] sm:$0xff] %vm33, 0.0
  %v109 = vld [vmem:[%s2] sm:$0xff]
  %v110 = vld [vmem:[%s2 + $0x8] sm:$0xff]
  %v111 = vld [vmem:[%s2 + $0x10] sm:$0xff]
  %v112 = vld [vmem:[%s2 + $0x18] sm:$0xff]
  %v113 = vlaneseq
  %v114 = vand.u32 %v113, 127
  %vm115 = vcmp.lt.s32.totalorder %v114, 0
  %v116 = vsub.s32 0, %v114
  %v117 = vsel %vm115, %v116, %v114
  %v118 = vshrl.u32 %v117, 5
  %v119 = vand.u32 %v117, 31
  %v120 = vsub.s32 0, %v119
  %v121 = vsel %vm115, %v120, %v119
  %vm122 = vcmp.ne.s32.totalorder %v121, 0
  %vm123 = vcmp.lt.s32.totalorder %v121, 0
  %vm124 = vmand %vm123, %vm122
  %v125 = vadd.s32 %v121, 32
  %v126 = vsel %vm124, %v125, %v121
  %vm127 = vcmp.lt.s32.totalorder %v126, 16
  loop: start=0, step=1, limit=8
  $region18: #{lstm_node_forward.5} parent=0 // loop_pre_header
    _
  $region19: #{lstm_node_forward.5} parent=0 // loop_header
    %s129 = sphi 0, %s133
    %p130 = scmp.ge.s32.totalorder %s129, 8
  $region20: #{lstm_node_forward.5} parent=0 // loop_header_branch
    %132 = sbr.rel (%p130) target = $region24
  $region21: #{lstm_node_forward.5} parent=0 // loop_body
    %s134 = smul.u32 %s129, 8
    %s135 = ssub.s32 7, %s129
    %s136 = smul.u32 %s135, 8
    %s137 = scalar_lea.vmem [#allocation2], %s134
    %v138 = vld [vmem:[%s137] sm:$0xff]
    %s139 = scalar_lea.vmem [#allocation2], %s136
    %v140 = vld [vmem:[%s139] sm:$0xff]
    %v141 = vld [vmem:[#allocation5] sm:$0xff]
    %v143 = vsel %vm33, %v141, 0
    %145 = vmatpush.msra.mxu0 0.0
    %146 = vmatpush.msra.mxu0 0.0
    %147 = vmatpush.msra.mxu0 0.0
    %148 = vmatpush.msra.mxu0 0.0
    %149 = vmatpush.msra.mxu0 0.0
    %150 = vmatpush.msra.mxu0 0.0
    %151 = vmatpush.msra.mxu0 0.0
    %152 = vmatpush.msra.mxu0 0.0
    %153 = vmatpush.msra.mxu0 0.0
    %154 = vmatpush.msra.mxu0 0.0
    %155 = vmatpush.msra.mxu0 0.0
    %156 = vmatpush.msra.mxu0 0.0
    %157 = vmatpush.msra.mxu0 %v112
    %158 = vmatpush.msra.mxu0 %v111
    %159 = vmatpush.msra.mxu0 %v110
    %160 = vmatpush.msra.mxu0 %v109
    %161 = vmatmul.f32.gmra.mxu0 %v143
    %v162 = vpop.f32.mrf.mxu0
    %v163 = vadd.f32 0.0, %v162
    %164 = vdwg.mxu0
    %v165 = vsel %vm127, %v138, %v140
    %v166 = vadd.f32 %v165, %v163
    %v167 = vxor.u32 %v166, 2147483648
    %v168 = vmul.f32 %v167, 1.442695
    %v169 = vpow.pop %v168
    %v170 = vadd.f32 %v169, 1.0
    %v171 = vrcp.pop %v170
    %v172 = vmul.f32 %v170, %v171
    %v173 = vsub.f32 1.0, %v172
    %v174 = vmul.f32 %v171, %v173
    %v175 = vadd.f32 %v171, %v174
    %vm176 = vweird.f32 %v170
    %vm177 = vweird.f32 %v171
    %vm178 = vmor %vm176, %vm177
    %v179 = vsel %vm178, %v171, %v175
    %v180 = vand.u32 2147483647, %v170
    %vm181 = vcmp.eq.f32.partialorder %v180, 8.507059e+37
    %v182 = vand.u32 %v170, 2147483648
    %v183 = vor.u32 1.1754944e-38, %v182
    %v184 = vsel %vm181, %v183, %v179
    %v185 = vmul.f32 1.0, %v184
    %v186 = vtanh.pop %v166
    %v187 = vld [vmem:[#allocation6] sm:$0xff]
    %189 = vrot.lane.b32.xlu0 %v187, 32
    %v190 = vpop.permute.xlu0 %189
    %v192 = vmul.f32 %v185, %v190
    %194 = vrot.lane.b32.xlu0 %v186, 64
    %v195 = vpop.permute.xlu0 %194
    %v197 = vmul.f32 %v185, %v195
    %199 = vrot.lane.b32.xlu0 %v197, 32
    %v200 = vpop.permute.xlu0 %199
    %v202 = vadd.f32 %v192, %v200
    %v203 = vtanh.pop %v202
    %205 = vrot.lane.b32.xlu0 %v203, 64
    %v206 = vpop.permute.xlu0 %205
    %v208 = vmul.f32 %v185, %v206
    %210 = vrot.lane.b32.xlu0 %v202, 96
    %v211 = vpop.permute.xlu0 %210
    %213 = vst.msk [vmem:[#allocation6] sm:$0xff] %vm33, %v211
    %215 = vrot.lane.b32.xlu0 %v208, 32
    %v216 = vpop.permute.xlu0 %215
    %218 = vst.msk [vmem:[#allocation5] sm:$0xff] %vm33, %v216
    %s219 = scalar_lea.vmem [#allocation3], %s134
    %220 = vst.msk [vmem:[%s219] sm:$0xff] %vm33, %v216
    %s221 = scalar_lea.vmem [#allocation4], %s136
    %222 = vst.msk [vmem:[%s221] sm:$0xff] %vm33, %v216
  $region22: #{lstm_node_forward.5} parent=0 // loop_footer
    %s133 = sadd.s32 1, %s129
  $region23: #{lstm_node_forward.5} parent=0 // loop_footer_branch
    %128 = sbr.rel target = $region19
  $region24: #{lstm_node_forward.5} parent=0 // loop_exit
    _
  %vm223 = vcmp.lt.s32.totalorder %v114, 16
  %v224 = vld [vmem:[#allocation3] sm:$0xff]
  %v225 = vld [vmem:[#allocation3 + $0x8] sm:$0xff]
  %v226 = vld [vmem:[#allocation3 + $0x10] sm:$0xff]
  %v227 = vld [vmem:[#allocation3 + $0x18] sm:$0xff]
  %v228 = vld [vmem:[#allocation3 + $0x20] sm:$0xff]
  %v229 = vld [vmem:[#allocation3 + $0x28] sm:$0xff]
  %v230 = vld [vmem:[#allocation3 + $0x30] sm:$0xff]
  %v231 = vld [vmem:[#allocation3 + $0x38] sm:$0xff]
  %v232 = vld [vmem:[#allocation4] sm:$0xff]
  %v233 = vld [vmem:[#allocation4 + $0x8] sm:$0xff]
  %v234 = vld [vmem:[#allocation4 + $0x10] sm:$0xff]
  %v235 = vld [vmem:[#allocation4 + $0x18] sm:$0xff]
  %v236 = vld [vmem:[#allocation4 + $0x20] sm:$0xff]
  %v237 = vld [vmem:[#allocation4 + $0x28] sm:$0xff]
  %v238 = vld [vmem:[#allocation4 + $0x30] sm:$0xff]
  %v239 = vld [vmem:[#allocation4 + $0x38] sm:$0xff]
  %v240 = vsel %vm223, %v224, %v232
  %v241 = vsel %vm223, %v225, %v233
  %v242 = vsel %vm223, %v226, %v234
  %v243 = vsel %vm223, %v227, %v235
  %v244 = vsel %vm223, %v228, %v236
  %v245 = vsel %vm223, %v229, %v237
  %v246 = vsel %vm223, %v230, %v238
  %v247 = vsel %vm223, %v231, %v239
  %248 = vst.msk [vmem:[%s4] sm:$0xff] %vm33, %v240
  %249 = vst.msk [vmem:[%s4 + $0x8] sm:$0xff] %vm33, %v241
  %250 = vst.msk [vmem:[%s4 + $0x10] sm:$0xff] %vm33, %v242
  %251 = vst.msk [vmem:[%s4 + $0x18] sm:$0xff] %vm33, %v243
  %252 = vst.msk [vmem:[%s4 + $0x20] sm:$0xff] %vm33, %v244
  %253 = vst.msk [vmem:[%s4 + $0x28] sm:$0xff] %vm33, %v245
  %254 = vst.msk [vmem:[%s4 + $0x30] sm:$0xff] %vm33, %v246
  %255 = vst.msk [vmem:[%s4 + $0x38] sm:$0xff] %vm33, %v247
  // Predicated region
  $region25: #{lstm_node_forward.5} parent=0 // pred_check
    _
  $region26: #{lstm_node_forward.5} parent=0 // pred_check_branch
    %257 = sbr.rel (0) target = $region28
  $region27: #{lstm_node_forward.5} parent=0 // pred_region
    _
  $region28: #{lstm_node_forward.5} parent=0 // pred_fallthru
    _
  // Predicated region
  $region29: #{lstm_node_forward.5} parent=0 // pred_check
    _
  $region30: #{lstm_node_forward.5} parent=0 // pred_check_branch
    %259 = sbr.rel (0) target = $region32
  $region31: #{lstm_node_forward.5} parent=0 // pred_region
    _
  $region32: #{lstm_node_forward.5} parent=0 // pred_fallthru
    _

// kernel: lstm_node_forward.7
$region0: #{lstm_node_forward.7}
  #allocation0 [shape = 'u32[]', space=smem, size = 0x4, offset = 0x4, fixed_abs, tag = 'smem constant byte address 0x4 - core index']
  #allocation1 [shape = 'u32[72,128]{1,0:T(1,128)}', space=vmem, size = 0x9000, scoped, tag = 'internal scratch']
  %s0 = inlined_call_operand.vmem [shape: f32[64,32], index: 0, kind: input, shape index: {}]
  %s1 = inlined_call_operand.vmem [shape: f32[32,32], index: 1, kind: input, shape index: {}]
  %s2 = inlined_call_operand.vmem [shape: f32[1,32], index: 2, kind: input, shape index: {}]
  %s3 = inlined_call_operand.vmem [shape: f32[32,5], index: 3, kind: input, shape index: {}]
  %s4 = inlined_call_operand.vmem [shape: f32[1,5], index: 4, kind: input, shape index: {}]
  %s5 = inlined_call_operand.vmem [shape: f32[64,5], index: 5, kind: output, shape index: {}]
  %s6 = sld [smem:[#allocation0]]
  $region30: #{lstm_node_forward.7} parent=0
    _
  %s8 = ssub.s32 1, %s6
  %s9 = scalar_select 0, %s8, %s6
  // Predicated region
  $region2: #{lstm_node_forward.7} parent=0 // pred_check
    _
  $region3: #{lstm_node_forward.7} parent=0 // pred_check_branch
    %11 = sbr.rel (0) target = $region5
  $region4: #{lstm_node_forward.7} parent=0 // pred_region
    _
  $region5: #{lstm_node_forward.7} parent=0 // pred_fallthru
    _
  // Predicated region
  $region6: #{lstm_node_forward.7} parent=0 // pred_check
    _
  $region7: #{lstm_node_forward.7} parent=0 // pred_check_branch
    %13 = sbr.rel (0) target = $region9
  $region8: #{lstm_node_forward.7} parent=0 // pred_region
    _
  $region9: #{lstm_node_forward.7} parent=0 // pred_fallthru
    _
  // Predicated region
  $region10: #{lstm_node_forward.7} parent=0 // pred_check
    _
  $region11: #{lstm_node_forward.7} parent=0 // pred_check_branch
    %15 = sbr.rel (0) target = $region13
  $region12: #{lstm_node_forward.7} parent=0 // pred_region
    _
  $region13: #{lstm_node_forward.7} parent=0 // pred_fallthru
    _
  // Predicated region
  $region14: #{lstm_node_forward.7} parent=0 // pred_check
    _
  $region15: #{lstm_node_forward.7} parent=0 // pred_check_branch
    %17 = sbr.rel (0) target = $region17
  $region16: #{lstm_node_forward.7} parent=0 // pred_region
    _
  $region17: #{lstm_node_forward.7} parent=0 // pred_fallthru
    _
  // Predicated region
  $region18: #{lstm_node_forward.7} parent=0 // pred_check
    _
  $region19: #{lstm_node_forward.7} parent=0 // pred_check_branch
    %19 = sbr.rel (0) target = $region21
  $region20: #{lstm_node_forward.7} parent=0 // pred_region
    _
  $region21: #{lstm_node_forward.7} parent=0 // pred_fallthru
    _
  %v20 = vld [vmem:[%s0] sm:$0xff]
  %v21 = vld [vmem:[%s0 + $0x8] sm:$0xff]
  %v22 = vld [vmem:[%s0 + $0x10] sm:$0xff]
  %v23 = vld [vmem:[%s0 + $0x18] sm:$0xff]
  %v24 = vld [vmem:[%s0 + $0x20] sm:$0xff]
  %v25 = vld [vmem:[%s0 + $0x28] sm:$0xff]
  %v26 = vld [vmem:[%s0 + $0x30] sm:$0xff]
  %v27 = vld [vmem:[%s0 + $0x38] sm:$0xff]
  %v28 = vld [vmem:[%s1] sm:$0xff]
  %v29 = vld [vmem:[%s1 + $0x8] sm:$0xff]
  %v30 = vld [vmem:[%s1 + $0x10] sm:$0xff]
  %v31 = vld [vmem:[%s1 + $0x18] sm:$0xff]
  %v32 = vld [vmem:[%s2] sm:$0x1]
  %v34 = vperm.slane %v32, 0
  %vm36 = vcmask 261120
  %v38 = vsel %vm36, %v20, 0
  %v41 = vsel %vm36, %v21, 0
  %v44 = vsel %vm36, %v22, 0
  %v47 = vsel %vm36, %v23, 0
  %v50 = vsel %vm36, %v24, 0
  %v53 = vsel %vm36, %v25, 0
  %v56 = vsel %vm36, %v26, 0
  %v59 = vsel %vm36, %v27, 0
  %61 = vmatpush.msra.mxu0 0.0
  %62 = vmatpush.msra.mxu0 0.0
  %63 = vmatpush.msra.mxu0 0.0
  %64 = vmatpush.msra.mxu0 0.0
  %65 = vmatpush.msra.mxu0 0.0
  %66 = vmatpush.msra.mxu0 0.0
  %67 = vmatpush.msra.mxu0 0.0
  %68 = vmatpush.msra.mxu0 0.0
  %69 = vmatpush.msra.mxu0 0.0
  %70 = vmatpush.msra.mxu0 0.0
  %71 = vmatpush.msra.mxu0 0.0
  %72 = vmatpush.msra.mxu0 0.0
  %73 = vmatpush.msra.mxu0 %v31
  %74 = vmatpush.msra.mxu0 %v30
  %75 = vmatpush.msra.mxu0 %v29
  %76 = vmatpush.msra.mxu0 %v28
  %77 = vmatmul.f32.gmra.mxu0 %v38
  %v78 = vpop.f32.mrf.mxu0
  %v79 = vadd.f32 %v34, %v78
  %80 = vmatmul.f32.gmra.mxu0 %v41
  %v81 = vpop.f32.mrf.mxu0
  %v82 = vadd.f32 %v34, %v81
  %83 = vmatmul.f32.gmra.mxu0 %v44
  %v84 = vpop.f32.mrf.mxu0
  %v85 = vadd.f32 %v34, %v84
  %86 = vmatmul.f32.gmra.mxu0 %v47
  %v87 = vpop.f32.mrf.mxu0
  %v88 = vadd.f32 %v34, %v87
  %89 = vmatmul.f32.gmra.mxu0 %v50
  %v90 = vpop.f32.mrf.mxu0
  %v91 = vadd.f32 %v34, %v90
  %92 = vmatmul.f32.gmra.mxu0 %v53
  %v93 = vpop.f32.mrf.mxu0
  %v94 = vadd.f32 %v34, %v93
  %95 = vmatmul.f32.gmra.mxu0 %v56
  %v96 = vpop.f32.mrf.mxu0
  %v97 = vadd.f32 %v34, %v96
  %98 = vmatmul.f32.gmra.mxu0 %v59
  %v99 = vpop.f32.mrf.mxu0
  %v100 = vadd.f32 %v34, %v99
  %101 = vdwg.mxu0
  %v102 = vmax.f32 %v79, 0.0
  %v103 = vmax.f32 %v82, 0.0
  %v104 = vmax.f32 %v85, 0.0
  %v105 = vmax.f32 %v88, 0.0
  %v106 = vmax.f32 %v91, 0.0
  %v107 = vmax.f32 %v94, 0.0
  %v108 = vmax.f32 %v97, 0.0
  %v109 = vmax.f32 %v100, 0.0
  %v110 = vld [vmem:[%s3] sm:$0xff]
  %v111 = vld [vmem:[%s3 + $0x8] sm:$0xff]
  %v112 = vld [vmem:[%s3 + $0x10] sm:$0xff]
  %v113 = vld [vmem:[%s3 + $0x18] sm:$0xff]
  %v114 = vld [vmem:[%s4] sm:$0x1]
  %v116 = vperm.slane %v114, 0
  %v119 = vsel %vm36, %v102, 0
  %v122 = vsel %vm36, %v103, 0
  %v125 = vsel %vm36, %v104, 0
  %v128 = vsel %vm36, %v105, 0
  %v131 = vsel %vm36, %v106, 0
  %v134 = vsel %vm36, %v107, 0
  %v137 = vsel %vm36, %v108, 0
  %v140 = vsel %vm36, %v109, 0
  %142 = vmatpush.msra.mxu0 0.0
  %143 = vmatpush.msra.mxu0 0.0
  %144 = vmatpush.msra.mxu0 0.0
  %145 = vmatpush.msra.mxu0 0.0
  %146 = vmatpush.msra.mxu0 0.0
  %147 = vmatpush.msra.mxu0 0.0
  %148 = vmatpush.msra.mxu0 0.0
  %149 = vmatpush.msra.mxu0 0.0
  %150 = vmatpush.msra.mxu0 0.0
  %151 = vmatpush.msra.mxu0 0.0
  %152 = vmatpush.msra.mxu0 0.0
  %153 = vmatpush.msra.mxu0 0.0
  %154 = vmatpush.msra.mxu0 %v113
  %155 = vmatpush.msra.mxu0 %v112
  %156 = vmatpush.msra.mxu0 %v111
  %157 = vmatpush.msra.mxu0 %v110
  %158 = vmatmul.f32.gmra.mxu0 %v119
  %v159 = vpop.f32.mrf.mxu0
  %v160 = vadd.f32 %v116, %v159
  %161 = vmatmul.f32.gmra.mxu0 %v122
  %v162 = vpop.f32.mrf.mxu0
  %v163 = vadd.f32 %v116, %v162
  %164 = vmatmul.f32.gmra.mxu0 %v125
  %v165 = vpop.f32.mrf.mxu0
  %v166 = vadd.f32 %v116, %v165
  %167 = vmatmul.f32.gmra.mxu0 %v128
  %v168 = vpop.f32.mrf.mxu0
  %v169 = vadd.f32 %v116, %v168
  %170 = vmatmul.f32.gmra.mxu0 %v131
  %v171 = vpop.f32.mrf.mxu0
  %v172 = vadd.f32 %v116, %v171
  %173 = vmatmul.f32.gmra.mxu0 %v134
  %v174 = vpop.f32.mrf.mxu0
  %v175 = vadd.f32 %v116, %v174
  %176 = vmatmul.f32.gmra.mxu0 %v137
  %v177 = vpop.f32.mrf.mxu0
  %v178 = vadd.f32 %v116, %v177
  %179 = vmatmul.f32.gmra.mxu0 %v140
  %v180 = vpop.f32.mrf.mxu0
  %v181 = vadd.f32 %v116, %v180
  %182 = vdwg.mxu0
  %vm183 = vcmask 39936
  %184 = vst.msk [vmem:[%s5] sm:$0xff] %vm183, %v160
  %185 = vst.msk [vmem:[%s5 + $0x8] sm:$0xff] %vm183, %v163
  %186 = vst.msk [vmem:[%s5 + $0x10] sm:$0xff] %vm183, %v166
  %187 = vst.msk [vmem:[%s5 + $0x18] sm:$0xff] %vm183, %v169
  %188 = vst.msk [vmem:[%s5 + $0x20] sm:$0xff] %vm183, %v172
  %189 = vst.msk [vmem:[%s5 + $0x28] sm:$0xff] %vm183, %v175
  %190 = vst.msk [vmem:[%s5 + $0x30] sm:$0xff] %vm183, %v178
  %191 = vst.msk [vmem:[%s5 + $0x38] sm:$0xff] %vm183, %v181
  // Predicated region
  $region22: #{lstm_node_forward.7} parent=0 // pred_check
    _
  $region23: #{lstm_node_forward.7} parent=0 // pred_check_branch
    %193 = sbr.rel (0) target = $region25
  $region24: #{lstm_node_forward.7} parent=0 // pred_region
    _
  $region25: #{lstm_node_forward.7} parent=0 // pred_fallthru
    _
  // Predicated region
  $region26: #{lstm_node_forward.7} parent=0 // pred_check
    _
  $region27: #{lstm_node_forward.7} parent=0 // pred_check_branch
    %195 = sbr.rel (0) target = $region29
  $region28: #{lstm_node_forward.7} parent=0 // pred_region
    _
  $region29: #{lstm_node_forward.7} parent=0 // pred_fallthru
    _

// kernel: lstm_node_forward.4
$region0: #{lstm_node_forward.4}
  #allocation0 [shape = 'u32[]', space=smem, size = 0x4, offset = 0x4, fixed_abs, tag = 'smem constant byte address 0x4 - core index']
  #allocation1 [shape = 'u32[72,128]{1,0:T(1,128)}', space=vmem, size = 0x9000, scoped, tag = 'internal scratch']
  #allocation2 [shape = 'f32[64,128]{1,0:T(8,128)}', space=vmem, size = 0x8000, scoped, tag = 'scratch operand']
  #allocation3 [shape = 'f32[64,32]{1,0:T(8,128)}', space=vmem, size = 0x8000, scoped, tag = 'scratch operand']
  #allocation4 [shape = 'f32[64,32]{1,0:T(8,128)}', space=vmem, size = 0x8000, scoped, tag = 'scratch operand']
  #allocation5 [shape = 'f32[8,32]{1,0:T(8,128)}', space=vmem, size = 0x1000, scoped, tag = 'scratch operand']
  #allocation6 [shape = 'f32[8,32]{1,0:T(8,128)}', space=vmem, size = 0x1000, scoped, tag = 'scratch operand']
  %s0 = inlined_call_operand.vmem [shape: f32[64,8], index: 0, kind: input, shape index: {}]
  %s1 = inlined_call_operand.vmem [shape: f32[8,128], index: 1, kind: input, shape index: {}]
  %s2 = inlined_call_operand.vmem [shape: f32[32,128], index: 2, kind: input, shape index: {}]
  %s3 = inlined_call_operand.vmem [shape: f32[1,128], index: 3, kind: input, shape index: {}]
  %s4 = inlined_call_operand.vmem [shape: f32[64,32], index: 4, kind: output, shape index: {}]
  %s5 = sld [smem:[#allocation0]]
  $region33: #{lstm_node_forward.4} parent=0
    _
  %s7 = ssub.s32 1, %s5
  %s8 = scalar_select 0, %s7, %s5
  // Predicated region
  $region2: #{lstm_node_forward.4} parent=0 // pred_check
    _
  $region3: #{lstm_node_forward.4} parent=0 // pred_check_branch
    %10 = sbr.rel (0) target = $region5
  $region4: #{lstm_node_forward.4} parent=0 // pred_region
    _
  $region5: #{lstm_node_forward.4} parent=0 // pred_fallthru
    _
  // Predicated region
  $region6: #{lstm_node_forward.4} parent=0 // pred_check
    _
  $region7: #{lstm_node_forward.4} parent=0 // pred_check_branch
    %12 = sbr.rel (0) target = $region9
  $region8: #{lstm_node_forward.4} parent=0 // pred_region
    _
  $region9: #{lstm_node_forward.4} parent=0 // pred_fallthru
    _
  // Predicated region
  $region10: #{lstm_node_forward.4} parent=0 // pred_check
    _
  $region11: #{lstm_node_forward.4} parent=0 // pred_check_branch
    %14 = sbr.rel (0) target = $region13
  $region12: #{lstm_node_forward.4} parent=0 // pred_region
    _
  $region13: #{lstm_node_forward.4} parent=0 // pred_fallthru
    _
  // Predicated region
  $region14: #{lstm_node_forward.4} parent=0 // pred_check
    _
  $region15: #{lstm_node_forward.4} parent=0 // pred_check_branch
    %16 = sbr.rel (0) target = $region17
  $region16: #{lstm_node_forward.4} parent=0 // pred_region
    _
  $region17: #{lstm_node_forward.4} parent=0 // pred_fallthru
    _
  %v17 = vld [vmem:[%s0] sm:$0xff]
  %v18 = vld [vmem:[%s0 + $0x8] sm:$0xff]
  %v19 = vld [vmem:[%s0 + $0x10] sm:$0xff]
  %v20 = vld [vmem:[%s0 + $0x18] sm:$0xff]
  %v21 = vld [vmem:[%s0 + $0x20] sm:$0xff]
  %v22 = vld [vmem:[%s0 + $0x28] sm:$0xff]
  %v23 = vld [vmem:[%s0 + $0x30] sm:$0xff]
  %v24 = vld [vmem:[%s0 + $0x38] sm:$0xff]
  %v25 = vld [vmem:[%s1] sm:$0xff]
  %v26 = vld [vmem:[%s3] sm:$0x1]
  %v28 = vperm.slane %v26, 0
  %vm30 = vcmask 64512
  %v32 = vsel %vm30, %v17, 0
  %v35 = vsel %vm30, %v18, 0
  %v38 = vsel %vm30, %v19, 0
  %v41 = vsel %vm30, %v20, 0
  %v44 = vsel %vm30, %v21, 0
  %v47 = vsel %vm30, %v22, 0
  %v50 = vsel %vm30, %v23, 0
  %v53 = vsel %vm30, %v24, 0
  %55 = vmatpush.msra.mxu0 0.0
  %56 = vmatpush.msra.mxu0 0.0
  %57 = vmatpush.msra.mxu0 0.0
  %58 = vmatpush.msra.mxu0 0.0
  %59 = vmatpush.msra.mxu0 0.0
  %60 = vmatpush.msra.mxu0 0.0
  %61 = vmatpush.msra.mxu0 0.0
  %62 = vmatpush.msra.mxu0 0.0
  %63 = vmatpush.msra.mxu0 0.0
  %64 = vmatpush.msra.mxu0 0.0
  %65 = vmatpush.msra.mxu0 0.0
  %66 = vmatpush.msra.mxu0 0.0
  %67 = vmatpush.msra.mxu0 0.0
  %68 = vmatpush.msra.mxu0 0.0
  %69 = vmatpush.msra.mxu0 0.0
  %70 = vmatpush.msra.mxu0 %v25
  %71 = vmatmul.f32.gmra.mxu0 %v32
  %v72 = vpop.f32.mrf.mxu0
  %v73 = vadd.f32 %v28, %v72
  %74 = vmatmul.f32.gmra.mxu0 %v35
  %v75 = vpop.f32.mrf.mxu0
  %v76 = vadd.f32 %v28, %v75
  %77 = vmatmul.f32.gmra.mxu0 %v38
  %v78 = vpop.f32.mrf.mxu0
  %v79 = vadd.f32 %v28, %v78
  %80 = vmatmul.f32.gmra.mxu0 %v41
  %v81 = vpop.f32.mrf.mxu0
  %v82 = vadd.f32 %v28, %v81
  %83 = vmatmul.f32.gmra.mxu0 %v44
  %v84 = vpop.f32.mrf.mxu0
  %v85 = vadd.f32 %v28, %v84
  %86 = vmatmul.f32.gmra.mxu0 %v47
  %v87 = vpop.f32.mrf.mxu0
  %v88 = vadd.f32 %v28, %v87
  %89 = vmatmul.f32.gmra.mxu0 %v50
  %v90 = vpop.f32.mrf.mxu0
  %v91 = vadd.f32 %v28, %v90
  %92 = vmatmul.f32.gmra.mxu0 %v53
  %v93 = vpop.f32.mrf.mxu0
  %v94 = vadd.f32 %v28, %v93
  %95 = vdwg.mxu0
  %96 = vst [vmem:[#allocation2] sm:$0xff] %v73
  %97 = vst [vmem:[#allocation2 + $0x8] sm:$0xff] %v76
  %98 = vst [vmem:[#allocation2 + $0x10] sm:$0xff] %v79
  %99 = vst [vmem:[#allocation2 + $0x18] sm:$0xff] %v82
  %100 = vst [vmem:[#allocation2 + $0x20] sm:$0xff] %v85
  %101 = vst [vmem:[#allocation2 + $0x28] sm:$0xff] %v88
  %102 = vst [vmem:[#allocation2 + $0x30] sm:$0xff] %v91
  %103 = vst [vmem:[#allocation2 + $0x38] sm:$0xff] %v94
  %vm104 = vcmask 261120
  %105 = vst.msk [vmem:[#allocation5] sm:$0xff] %vm104, 0.0
  %106 = vst.msk [vmem:[#allocation6] sm:$0xff] %vm104, 0.0
  %v107 = vld [vmem:[%s2] sm:$0xff]
  %v108 = vld [vmem:[%s2 + $0x8] sm:$0xff]
  %v109 = vld [vmem:[%s2 + $0x10] sm:$0xff]
  %v110 = vld [vmem:[%s2 + $0x18] sm:$0xff]
  %v111 = vlaneseq
  %v112 = vand.u32 %v111, 127
  %vm113 = vcmp.lt.s32.totalorder %v112, 0
  %v114 = vsub.s32 0, %v112
  %v115 = vsel %vm113, %v114, %v112
  %v116 = vshrl.u32 %v115, 5
  %v117 = vand.u32 %v115, 31
  %v118 = vsub.s32 0, %v117
  %v119 = vsel %vm113, %v118, %v117
  %vm120 = vcmp.ne.s32.totalorder %v119, 0
  %vm121 = vcmp.lt.s32.totalorder %v119, 0
  %vm122 = vmand %vm121, %vm120
  %v123 = vadd.s32 %v119, 32
  %v124 = vsel %vm122, %v123, %v119
  %vm125 = vcmp.lt.s32.totalorder %v124, 16
  loop: start=0, step=1, limit=8
  $region18: #{lstm_node_forward.4} parent=0 // loop_pre_header
    _
  $region19: #{lstm_node_forward.4} parent=0 // loop_header
    %s127 = sphi 0, %s131
    %p128 = scmp.ge.s32.totalorder %s127, 8
  $region20: #{lstm_node_forward.4} parent=0 // loop_header_branch
    %130 = sbr.rel (%p128) target = $region24
  $region21: #{lstm_node_forward.4} parent=0 // loop_body
    %s132 = smul.u32 %s127, 8
    %s133 = ssub.s32 7, %s127
    %s134 = smul.u32 %s133, 8
    %s135 = scalar_lea.vmem [#allocation2], %s132
    %v136 = vld [vmem:[%s135] sm:$0xff]
    %s137 = scalar_lea.vmem [#allocation2], %s134
    %v138 = vld [vmem:[%s137] sm:$0xff]
    %v139 = vld [vmem:[#allocation5] sm:$0xff]
    %v141 = vsel %vm104, %v139, 0
    %143 = vmatpush.msra.mxu0 0.0
    %144 = vmatpush.msra.mxu0 0.0
    %145 = vmatpush.msra.mxu0 0.0
    %146 = vmatpush.msra.mxu0 0.0
    %147 = vmatpush.msra.mxu0 0.0
    %148 = vmatpush.msra.mxu0 0.0
    %149 = vmatpush.msra.mxu0 0.0
    %150 = vmatpush.msra.mxu0 0.0
    %151 = vmatpush.msra.mxu0 0.0
    %152 = vmatpush.msra.mxu0 0.0
    %153 = vmatpush.msra.mxu0 0.0
    %154 = vmatpush.msra.mxu0 0.0
    %155 = vmatpush.msra.mxu0 %v110
    %156 = vmatpush.msra.mxu0 %v109
    %157 = vmatpush.msra.mxu0 %v108
    %158 = vmatpush.msra.mxu0 %v107
    %159 = vmatmul.f32.gmra.mxu0 %v141
    %v160 = vpop.f32.mrf.mxu0
    %v161 = vadd.f32 0.0, %v160
    %162 = vdwg.mxu0
    %v163 = vsel %vm125, %v136, %v138
    %v164 = vadd.f32 %v163, %v161
    %v165 = vxor.u32 %v164, 2147483648
    %v166 = vmul.f32 %v165, 1.442695
    %v167 = vpow.pop %v166
    %v168 = vadd.f32 %v167, 1.0
    %v169 = vrcp.pop %v168
    %v170 = vmul.f32 %v168, %v169
    %v171 = vsub.f32 1.0, %v170
    %v172 = vmul.f32 %v169, %v171
    %v173 = vadd.f32 %v169, %v172
    %vm174 = vweird.f32 %v168
    %vm175 = vweird.f32 %v169
    %vm176 = vmor %vm174, %vm175
    %v177 = vsel %vm176, %v169, %v173
    %v178 = vand.u32 2147483647, %v168
    %vm179 = vcmp.eq.f32.partialorder %v178, 8.507059e+37
    %v180 = vand.u32 %v168, 2147483648
    %v181 = vor.u32 1.1754944e-38, %v180
    %v182 = vsel %vm179, %v181, %v177
    %v183 = vmul.f32 1.0, %v182
    %v184 = vtanh.pop %v164
    %v185 = vld [vmem:[#allocation6] sm:$0xff]
    %187 = vrot.lane.b32.xlu0 %v185, 32
    %v188 = vpop.permute.xlu0 %187
    %v190 = vmul.f32 %v183, %v188
    %192 = vrot.lane.b32.xlu0 %v184, 64
    %v193 = vpop.permute.xlu0 %192
    %v195 = vmul.f32 %v183, %v193
    %197 = vrot.lane.b32.xlu0 %v195, 32
    %v198 = vpop.permute.xlu0 %197
    %v200 = vadd.f32 %v190, %v198
    %v201 = vtanh.pop %v200
    %203 = vrot.lane.b32.xlu0 %v201, 64
    %v204 = vpop.permute.xlu0 %203
    %v206 = vmul.f32 %v183, %v204
    %208 = vrot.lane.b32.xlu0 %v200, 96
    %v209 = vpop.permute.xlu0 %208
    %211 = vst.msk [vmem:[#allocation6] sm:$0xff] %vm104, %v209
    %213 = vrot.lane.b32.xlu0 %v206, 32
    %v214 = vpop.permute.xlu0 %213
    %216 = vst.msk [vmem:[#allocation5] sm:$0xff] %vm104, %v214
    %s217 = scalar_lea.vmem [#allocation3], %s132
    %218 = vst.msk [vmem:[%s217] sm:$0xff] %vm104, %v214
    %s219 = scalar_lea.vmem [#allocation4], %s134
    %220 = vst.msk [vmem:[%s219] sm:$0xff] %vm104, %v214
  $region22: #{lstm_node_forward.4} parent=0 // loop_footer
    %s131 = sadd.s32 1, %s127
  $region23: #{lstm_node_forward.4} parent=0 // loop_footer_branch
    %126 = sbr.rel target = $region19
  $region24: #{lstm_node_forward.4} parent=0 // loop_exit
    _
  %vm221 = vcmp.lt.s32.totalorder %v112, 16
  %v222 = vld [vmem:[#allocation3] sm:$0xff]
  %v223 = vld [vmem:[#allocation3 + $0x8] sm:$0xff]
  %v224 = vld [vmem:[#allocation3 + $0x10] sm:$0xff]
  %v225 = vld [vmem:[#allocation3 + $0x18] sm:$0xff]
  %v226 = vld [vmem:[#allocation3 + $0x20] sm:$0xff]
  %v227 = vld [vmem:[#allocation3 + $0x28] sm:$0xff]
  %v228 = vld [vmem:[#allocation3 + $0x30] sm:$0xff]
  %v229 = vld [vmem:[#allocation3 + $0x38] sm:$0xff]
  %v230 = vld [vmem:[#allocation4] sm:$0xff]
  %v231 = vld [vmem:[#allocation4 + $0x8] sm:$0xff]
  %v232 = vld [vmem:[#allocation4 + $0x10] sm:$0xff]
  %v233 = vld [vmem:[#allocation4 + $0x18] sm:$0xff]
  %v234 = vld [vmem:[#allocation4 + $0x20] sm:$0xff]
  %v235 = vld [vmem:[#allocation4 + $0x28] sm:$0xff]
  %v236 = vld [vmem:[#allocation4 + $0x30] sm:$0xff]
  %v237 = vld [vmem:[#allocation4 + $0x38] sm:$0xff]
  %v238 = vsel %vm221, %v222, %v230
  %v239 = vsel %vm221, %v223, %v231
  %v240 = vsel %vm221, %v224, %v232
  %v241 = vsel %vm221, %v225, %v233
  %v242 = vsel %vm221, %v226, %v234
  %v243 = vsel %vm221, %v227, %v235
  %v244 = vsel %vm221, %v228, %v236
  %v245 = vsel %vm221, %v229, %v237
  %246 = vst.msk [vmem:[%s4] sm:$0xff] %vm104, %v238
  %247 = vst.msk [vmem:[%s4 + $0x8] sm:$0xff] %vm104, %v239
  %248 = vst.msk [vmem:[%s4 + $0x10] sm:$0xff] %vm104, %v240
  %249 = vst.msk [vmem:[%s4 + $0x18] sm:$0xff] %vm104, %v241
  %250 = vst.msk [vmem:[%s4 + $0x20] sm:$0xff] %vm104, %v242
  %251 = vst.msk [vmem:[%s4 + $0x28] sm:$0xff] %vm104, %v243
  %252 = vst.msk [vmem:[%s4 + $0x30] sm:$0xff] %vm104, %v244
  %253 = vst.msk [vmem:[%s4 + $0x38] sm:$0xff] %vm104, %v245
  // Predicated region
  $region25: #{lstm_node_forward.4} parent=0 // pred_check
    _
  $region26: #{lstm_node_forward.4} parent=0 // pred_check_branch
    %255 = sbr.rel (0) target = $region28
  $region27: #{lstm_node_forward.4} parent=0 // pred_region
    _
  $region28: #{lstm_node_forward.4} parent=0 // pred_fallthru
    _
  // Predicated region
  $region29: #{lstm_node_forward.4} parent=0 // pred_check
    _
  $region30: #{lstm_node_forward.4} parent=0 // pred_check_branch
    %257 = sbr.rel (0) target = $region32
  $region31: #{lstm_node_forward.4} parent=0 // pred_region
    _
  $region32: #{lstm_node_forward.4} parent=0 // pred_fallthru
    _

</llo_original>
